<compile_context>
chip_gen: v5e
topology: v5e:2x2
jax: 0.10.0
libtpu: 0.0.40
codegen_flags: <defaults>
</compile_context>

<pallas_src>
import jax
import jax.numpy as jnp
import numpy as np
from jax.experimental import pallas as pl
from jax.experimental.pallas import tpu as pltpu


def _round_up(x, m):
    return (x + m - 1) // m * m


def _lm_crit_kernel(inp_ref, tgt_ref, msk_ref, tok_out_ref, acc_ref):
    """One (token-tile i, vocab-tile j) grid step.

    inp_ref:     (TT, TV) log-probs, native dtype
    tgt_ref:     (TT, 1)  int32 target ids
    msk_ref:     (TT, 1)  f32 mask
    tok_out_ref: (1, 1, TT) lane-dense per-token masked NLL (f32)
    acc_ref:     (TT, 1)  f32 scratch: running gathered log-prob across vocab tiles
    """
    j = pl.program_id(1)
    nv = pl.num_programs(1)

    @pl.when(j == 0)
    def _():
        acc_ref[...] = jnp.zeros_like(acc_ref)

    tv = inp_ref.shape[1]
    logp = inp_ref[...].astype(jnp.float32)                        # upcast in-kernel only
    tgt_local = tgt_ref[...] - j * tv                              # (TT, 1) shift target, not the iota
    lane_ids = jax.lax.broadcasted_iota(jnp.int32, logp.shape, 1)  # (TT, TV)
    # gather(2, target) == select-at-target then XLU lane reduction
    picked = jnp.sum(jnp.where(lane_ids == tgt_local, logp, 0.0),
                     axis=-1, keepdims=True)                       # (TT, 1)
    acc_ref[...] += picked

    @pl.when(j == nv - 1)
    def _():
        out = -acc_ref[...] * msk_ref[...]                         # masked NLL per token, f32
        tok_out_ref[...] = out.reshape(1, 1, -1)                   # lane-dense (1, 1, TT) store


def language_model_criterion(inp, target, mask, reduction="mean",
                             tile_tokens=None, tile_vocab=None):
    """Pallas equivalent of LanguageModelCriterion.forward.

    inp:    (N, L, V) log-probabilities (f32 or bf16)
    target: (N, >=L) int token ids
    mask:   (N, >=L) float mask
    """
    N, L, V = inp.shape
    target = target[:, :L].astype(jnp.int32)
    mask_f = mask[:, :L].astype(jnp.float32)

    num_tok = N * L
    itemsize = jnp.dtype(inp.dtype).itemsize

    # ---- token tile: lane-dense multiple of 128 ----
    if tile_tokens is None:
        tile_tokens = 512
    tile_tokens = min(tile_tokens, _round_up(num_tok, 128))
    tile_tokens = max(128, _round_up(tile_tokens, 128))

    # ---- vocab tile: largest 128-multiple slab within the VMEM budget ----
    budget = 8 << 20  # bytes per single (un-double-buffered) log-prob block
    max_tv = max(128, (budget // (tile_tokens * itemsize)) // 128 * 128)
    if tile_vocab is None:
        tile_vocab = V if V <= max_tv else max_tv
    tile_vocab = min(tile_vocab, V)
    assert tile_vocab == V or tile_vocab % 128 == 0, \
        "tile_vocab must be a multiple of 128 or the full vocab"

    grid_tok = pl.cdiv(num_tok, tile_tokens)
    grid_voc = pl.cdiv(V, tile_vocab)
    num_tok_p = grid_tok * tile_tokens
    pad = num_tok_p - num_tok

    inp2 = inp.reshape(num_tok, V)        # free reshape; streamed in native dtype
    tgt2 = target.reshape(num_tok, 1)
    msk2 = mask_f.reshape(num_tok, 1)
    if pad:
        # tiny (N*L, 1) arrays -> padding is negligible
        tgt2 = jnp.pad(tgt2, ((0, pad), (0, 0)))
        msk2 = jnp.pad(msk2, ((0, pad), (0, 0)))
        if num_tok < tile_tokens:
            # only when a single block would exceed the whole array; otherwise the
            # boundary block is handled by Pallas OOB masking (no full-tensor copy).
            inp2 = jnp.pad(inp2, ((0, pad), (0, 0)))

    # Explicit VMEM budget: double-buffered in/out blocks + scratch + headroom,
    # capped well below v7x's 64 MiB physical VMEM.
    blk_bytes = tile_tokens * tile_vocab * itemsize
    needed = (2 * blk_bytes                      # log-prob block, double-buffered
              + 2 * 2 * tile_tokens * 4          # tgt + msk blocks
              + 2 * tile_tokens * 4              # output block
              + tile_tokens * 128 * 4)           # accumulator scratch (lane-padded)
    vmem_limit = int(min(max(needed + (4 << 20), 32 << 20), 48 << 20))

    tok_out = pl.pallas_call(
        _lm_crit_kernel,
        out_shape=jax.ShapeDtypeStruct((grid_tok, 1, tile_tokens), jnp.float32),
        grid_spec=pltpu.PrefetchScalarGridSpec(
            num_scalar_prefetch=0,
            grid=(grid_tok, grid_voc),
            in_specs=[
                pl.BlockSpec((tile_tokens, tile_vocab), lambda i, j: (i, j)),
                pl.BlockSpec((tile_tokens, 1), lambda i, j: (i, 0)),
                pl.BlockSpec((tile_tokens, 1), lambda i, j: (i, 0)),
            ],
            out_specs=pl.BlockSpec((1, 1, tile_tokens), lambda i, j: (i, 0, 0)),
            scratch_shapes=[pltpu.VMEM((tile_tokens, 1), jnp.float32)],
        ),
        compiler_params=pltpu.CompilerParams(
            dimension_semantics=("parallel", "arbitrary"),
            vmem_limit_bytes=vmem_limit),
    )(inp2, tgt2, msk2)

    # Tiny wrapper-side reductions (keeps the kernel grid parallel across cores).
    tok = tok_out.reshape(-1)[:num_tok].reshape(N, L)   # f32 per-token masked NLL
    if reduction == "none":
        return tok.sum(axis=1) / mask_f.sum(axis=1)
    elif reduction == "mean":
        return tok.sum() / mask_f.sum()
    else:
        return tok


def _reference(inp, target, mask, reduction="mean"):
    N, L, V = inp.shape
    target = target[:, :L].astype(jnp.int32)
    mask = mask[:, :L].astype(jnp.float32)
    picked = jnp.take_along_axis(inp.astype(jnp.float32),
                                 target[..., None], axis=2)[..., 0]
    out = -picked * mask
    if reduction == "none":
        return out.sum(1) / mask.sum(1)
    elif reduction == "mean":
        return jnp.sum(out) / jnp.sum(mask)
    return out


if __name__ == "__main__":
    key = jax.random.PRNGKey(0)
    k1, k2, k3, k4, k5, k6 = jax.random.split(key, 6)

    # ---- Test 1: f32, single vocab tile (N=2, L=8, V=128) ----
    N, L, V = 2, 8, 128
    L_tgt = L + 2
    logits = jax.random.normal(k1, (N, L, V), dtype=jnp.float32)
    logprobs = jax.nn.log_softmax(logits, axis=-1)
    target = jax.random.randint(k2, (N, L_tgt), 0, V, dtype=jnp.int32)
    valid_len = jnp.array([6, 8], dtype=jnp.int32)
    mask = (jnp.arange(L_tgt)[None, :] < valid_len[:, None]).astype(jnp.float32)

    loss_mean = jax.block_until_ready(
        language_model_criterion(logprobs, target, mask, reduction="mean"))
    loss_none = jax.block_until_ready(
        language_model_criterion(logprobs, target, mask, reduction="none"))
    ref_mean = _reference(logprobs, target, mask, reduction="mean")
    ref_none = _reference(logprobs, target, mask, reduction="none")
    assert np.allclose(np.asarray(loss_mean), np.asarray(ref_mean), rtol=1e-5, atol=1e-5)
    assert np.allclose(np.asarray(loss_none), np.asarray(ref_none), rtol=1e-5, atol=1e-5)

    # ---- Test 2: bf16 log-probs, forced vocab tiling (V=256, tile_vocab=128) ----
    N2, L2, V2 = 2, 8, 256
    logits2 = jax.random.normal(k3, (N2, L2, V2), dtype=jnp.float32)
    logprobs2 = jax.nn.log_softmax(logits2, axis=-1).astype(jnp.bfloat16)
    target2 = jax.random.randint(k4, (N2, L2 + 2), 0, V2, dtype=jnp.int32)
    valid_len2 = jnp.array([5, 7], dtype=jnp.int32)
    mask2 = (jnp.arange(L2 + 2)[None, :] < valid_len2[:, None]).astype(jnp.float32)

    loss2 = jax.block_until_ready(
        language_model_criterion(logprobs2, target2, mask2,
                                 reduction="mean", tile_vocab=128))
    ref2 = _reference(logprobs2, target2, mask2, reduction="mean")
    assert np.allclose(np.asarray(loss2), np.asarray(ref2), rtol=1e-3, atol=1e-3)

    # ---- Test 3: non-divisible token and vocab boundaries (masked boundary blocks,
    #              no full-tensor pad copy): N=3, L=50 (150 tokens), V=200 ----
    N3, L3, V3 = 3, 50, 200
    logits3 = jax.random.normal(k5, (N3, L3, V3), dtype=jnp.float32)
    logprobs3 = jax.nn.log_softmax(logits3, axis=-1)
    target3 = jax.random.randint(k6, (N3, L3 + 3), 0, V3, dtype=jnp.int32)
    valid_len3 = jnp.array([50, 33, 47], dtype=jnp.int32)
    mask3 = (jnp.arange(L3 + 3)[None, :] < valid_len3[:, None]).astype(jnp.float32)

    loss3 = jax.block_until_ready(
        language_model_criterion(logprobs3, target3, mask3, reduction="mean",
                                 tile_tokens=128, tile_vocab=128))
    ref3 = _reference(logprobs3, target3, mask3, reduction="mean")
    assert np.allclose(np.asarray(loss3), np.asarray(ref3), rtol=1e-5, atol=1e-5)

    print("KERNEL_OK")
</pallas_src>

<mosaic_0001>
module attributes {stable_mosaic.version = 11 : i64} {
  func.func @_lm_crit_kernel(%arg0: i32, %arg1: i32, %arg2: memref<128x128xf32, #tpu.memory_space<vmem>>, %arg3: memref<128x1xi32, #tpu.memory_space<vmem>>, %arg4: memref<128x1xf32, #tpu.memory_space<vmem>>, %arg5: memref<1x1x128xf32, #tpu.memory_space<vmem>>, %arg6: memref<128x1xf32, #tpu.memory_space<vmem>>) attributes {dimension_semantics = [#tpu.dimension_semantics<parallel>, #tpu.dimension_semantics<arbitrary>], iteration_bounds = array<i64: 1, 1>, scalar_prefetch = 0 : i64, scratch_operands = 1 : i64, tpu.core_type = #tpu.core_type<tc>, window_params = [{transform_indices = @transform_0, window_bounds = array<i64: 128, 128>}, {transform_indices = @transform_1, window_bounds = array<i64: 128, 1>}, {transform_indices = @transform_2, window_bounds = array<i64: 128, 1>}, {transform_indices = @transform_3, window_bounds = array<i64: 1, 1, 128>}]} {
    %c0_i32 = arith.constant 0 : i32
    %0 = arith.cmpi eq, %arg1, %c0_i32 : i32
    %1 = arith.extui %0 : i1 to i32
    %c0_i32_0 = arith.constant 0 : i32
    %2 = arith.cmpi ne, %1, %c0_i32_0 : i32
    scf.if %2 {
      %cst_11 = arith.constant 0.000000e+00 : f32
      %21 = vector.broadcast %cst_11 : f32 to vector<128x1xf32>
      %c0_12 = arith.constant 0 : index
      %c0_13 = arith.constant 0 : index
      %22 = vector.load %arg6[%c0_12, %c0_13] : memref<128x1xf32, #tpu.memory_space<vmem>>, vector<128x1xf32>
      tpu.vector_store %arg6[%c0_12, %c0_13], %21 {strides = array<i32>} : memref<128x1xf32, #tpu.memory_space<vmem>>, vector<128x1xf32>,
    } else {
    }
    %c0 = arith.constant 0 : index
    %c0_1 = arith.constant 0 : index
    %3 = vector.load %arg2[%c0, %c0_1] : memref<128x128xf32, #tpu.memory_space<vmem>>, vector<128x128xf32>
    %c0_2 = arith.constant 0 : index
    %c0_3 = arith.constant 0 : index
    %4 = vector.load %arg3[%c0_2, %c0_3] : memref<128x1xi32, #tpu.memory_space<vmem>>, vector<128x1xi32>
    %c128_i32 = arith.constant 128 : i32
    %5 = arith.muli %arg1, %c128_i32 : i32
    %6 = vector.broadcast %5 : i32 to vector<128x1xi32>
    %7 = arith.subi %4, %6 : vector<128x1xi32>
    %8 = tpu.iota {dimensions = array<i32: 1>} : vector<128x128xi32>
    %9 = vector.broadcast %7 : vector<128x1xi32> to vector<128x128xi32>
    %10 = arith.cmpi eq, %8, %9 : vector<128x128xi32>
    %cst = arith.constant 0.000000e+00 : f32
    %11 = vector.broadcast %cst : f32 to vector<128x128xf32>
    %12 = arith.select %10, %3, %11 : vector<128x128xi1>, vector<128x128xf32>
    %cst_4 = arith.constant dense<0.000000e+00> : vector<128xf32>
    %13 = vector.multi_reduction <add>, %12, %cst_4 [1] : vector<128x128xf32> to vector<128xf32>
    %14 = vector.shape_cast %13 : vector<128xf32> to vector<128x1xf32>
    %c0_5 = arith.constant 0 : index
    %c0_6 = arith.constant 0 : index
    %15 = vector.load %arg6[%c0_5, %c0_6] : memref<128x1xf32, #tpu.memory_space<vmem>>, vector<128x1xf32>
    %16 = arith.addf %15, %14 : vector<128x1xf32>
    %c0_7 = arith.constant 0 : index
    %c0_8 = arith.constant 0 : index
    %17 = vector.load %arg6[%c0_7, %c0_8] : memref<128x1xf32, #tpu.memory_space<vmem>>, vector<128x1xf32>
    tpu.vector_store %arg6[%c0_7, %c0_8], %16 {strides = array<i32>} : memref<128x1xf32, #tpu.memory_space<vmem>>, vector<128x1xf32>,
    %c0_i32_9 = arith.constant 0 : i32
    %18 = arith.cmpi eq, %arg1, %c0_i32_9 : i32
    %19 = arith.extui %18 : i1 to i32
    %c0_i32_10 = arith.constant 0 : i32
    %20 = arith.cmpi ne, %19, %c0_i32_10 : i32
    scf.if %20 {
      %c0_11 = arith.constant 0 : index
      %c0_12 = arith.constant 0 : index
      %21 = vector.load %arg6[%c0_11, %c0_12] : memref<128x1xf32, #tpu.memory_space<vmem>>, vector<128x1xf32>
      %cst_13 = arith.constant 0.000000e+00 : f32
      %22 = vector.broadcast %cst_13 : f32 to vector<128x1xf32>
      %23 = arith.subf %22, %21 : vector<128x1xf32>
      %c0_14 = arith.constant 0 : index
      %c0_15 = arith.constant 0 : index
      %24 = vector.load %arg4[%c0_14, %c0_15] : memref<128x1xf32, #tpu.memory_space<vmem>>, vector<128x1xf32>
      %25 = arith.mulf %23, %24 : vector<128x1xf32>
      %26 = vector.shape_cast %25 : vector<128x1xf32> to vector<1x1x128xf32>
      %c0_16 = arith.constant 0 : index
      %c0_17 = arith.constant 0 : index
      %c0_18 = arith.constant 0 : index
      %27 = vector.load %arg5[%c0_16, %c0_17, %c0_18] : memref<1x1x128xf32, #tpu.memory_space<vmem>>, vector<1x1x128xf32>
      tpu.vector_store %arg5[%c0_16, %c0_17, %c0_18], %26 {strides = array<i32>} : memref<1x1x128xf32, #tpu.memory_space<vmem>>, vector<1x1x128xf32>,
    } else {
    }
    return
  }
  func.func @transform_0(%arg0: i32, %arg1: i32) -> (i32, i32) {
    %c0_i32 = arith.constant 0 : i32
    return %arg0, %arg1 : i32, i32
  }
  func.func @transform_1(%arg0: i32, %arg1: i32) -> (i32, i32) {
    %c0_i32 = arith.constant 0 : i32
    %c0_i32_0 = arith.constant 0 : i32
    return %arg0, %c0_i32 : i32, i32
  }
  func.func @transform_2(%arg0: i32, %arg1: i32) -> (i32, i32) {
    %c0_i32 = arith.constant 0 : i32
    %c0_i32_0 = arith.constant 0 : i32
    return %arg0, %c0_i32 : i32, i32
  }
  func.func @transform_3(%arg0: i32, %arg1: i32) -> (i32, i32, i32) {
    %c0_i32 = arith.constant 0 : i32
    %c0_i32_0 = arith.constant 0 : i32
    %c0_i32_1 = arith.constant 0 : i32
    return %arg0, %c0_i32, %c0_i32_0 : i32, i32, i32
  }
}

</mosaic_0001>

<llo_original>
// kernel: tpu_custom_call.1
$region0: #{tpu_custom_call.1}
  #allocation0 [shape = 'u32[]', space=smem, size = 0x4, offset = 0x4, fixed_abs, tag = 'smem constant byte address 0x4 - core index']
  #allocation1 [shape = 'u32[72,128]{1,0:T(1,128)}', space=vmem, size = 0x9000, scoped, tag = 'internal scratch']
  #allocation2 [shape = 'f32[128,1]{1,0:T(8,128)}', space=vmem, size = 0x10000, scoped, tag = 'scratch operand']
  %s0 = inlined_call_operand.vmem [shape: f32[128,128], index: 0, kind: input, shape index: {}]
  %s1 = inlined_call_operand.vmem [shape: s32[128,1], index: 1, kind: input, shape index: {}]
  %s2 = inlined_call_operand.vmem [shape: f32[128,1], index: 2, kind: input, shape index: {}]
  %s3 = inlined_call_operand.hbm [shape: f32[1,1,128], index: 3, kind: output, shape index: {}]
  %s4 = sld [smem:[#allocation0]]
  $region30: #{tpu_custom_call.1} parent=0
    _
  %s6 = ssub.s32 1, %s4
  %s7 = scalar_select 0, %s6, %s4
  $region1: #{tpu_custom_call.1} parent=0
    #allocation3 [shape = 'u8[512]{0}', space=vmem, size = 0x400, scoped, tag = 'output window, operand 0, single buffered']
    #allocation4 [shape = 's32[1]{0}', space=sflag, size = 0x4, scoped, tag = 'scoped memory for tpu_custom_call.1']
    %8 = vsyncpa [#allocation4], 0
    // Predicated region
    $region2: #{tpu_custom_call.1} parent=1 // pred_check
      _
    $region3: #{tpu_custom_call.1} parent=1 // pred_check_branch
      %10 = sbr.rel (0) target = $region5
    $region4: #{tpu_custom_call.1} parent=1 // pred_region
      _
    $region5: #{tpu_custom_call.1} parent=1 // pred_fallthru
      _
    // Predicated region
    $region6: #{tpu_custom_call.1} parent=1 // pred_check
      _
    $region7: #{tpu_custom_call.1} parent=1 // pred_check_branch
      %12 = sbr.rel (0) target = $region9
    $region8: #{tpu_custom_call.1} parent=1 // pred_region
      _
    $region9: #{tpu_custom_call.1} parent=1 // pred_fallthru
      _
    // Predicated region
    $region10: #{tpu_custom_call.1} parent=1 // pred_check
      _
    $region11: #{tpu_custom_call.1} parent=1 // pred_check_branch
      %14 = sbr.rel (0) target = $region13
    $region12: #{tpu_custom_call.1} parent=1 // pred_region
      _
    $region13: #{tpu_custom_call.1} parent=1 // pred_fallthru
      _
    %p15 = scmp.eq.s32.totalorder 0, 0
    // Predicated region
    $region14: #{tpu_custom_call.1} parent=1 // pred_check
      %p16 = pneg %p15
    $region15: #{tpu_custom_call.1} parent=1 // pred_check_branch
      %18 = sbr.rel (%p16) target = $region17
    $region16: #{tpu_custom_call.1} parent=1 // pred_region
      %vm19 = vcmask 7168
      %20 = vst.msk [vmem:[#allocation2] sm:$0xff] %vm19, 0.0
      %21 = vst.msk [vmem:[#allocation2 + $0x8] sm:$0xff] %vm19, 0.0
      %22 = vst.msk [vmem:[#allocation2 + $0x10] sm:$0xff] %vm19, 0.0
      %23 = vst.msk [vmem:[#allocation2 + $0x18] sm:$0xff] %vm19, 0.0
      %24 = vst.msk [vmem:[#allocation2 + $0x20] sm:$0xff] %vm19, 0.0
      %25 = vst.msk [vmem:[#allocation2 + $0x28] sm:$0xff] %vm19, 0.0
      %26 = vst.msk [vmem:[#allocation2 + $0x30] sm:$0xff] %vm19, 0.0
      %27 = vst.msk [vmem:[#allocation2 + $0x38] sm:$0xff] %vm19, 0.0
      %28 = vst.msk [vmem:[#allocation2 + $0x40] sm:$0xff] %vm19, 0.0
      %29 = vst.msk [vmem:[#allocation2 + $0x48] sm:$0xff] %vm19, 0.0
      %30 = vst.msk [vmem:[#allocation2 + $0x50] sm:$0xff] %vm19, 0.0
      %31 = vst.msk [vmem:[#allocation2 + $0x58] sm:$0xff] %vm19, 0.0
      %32 = vst.msk [vmem:[#allocation2 + $0x60] sm:$0xff] %vm19, 0.0
      %33 = vst.msk [vmem:[#allocation2 + $0x68] sm:$0xff] %vm19, 0.0
      %34 = vst.msk [vmem:[#allocation2 + $0x70] sm:$0xff] %vm19, 0.0
      %35 = vst.msk [vmem:[#allocation2 + $0x78] sm:$0xff] %vm19, 0.0
    $region17: #{tpu_custom_call.1} parent=1 // pred_fallthru
      _
    %v36 = vld [vmem:[%s0] sm:$0xff]
    %v37 = vld [vmem:[%s0 + $0x8] sm:$0xff]
    %v38 = vld [vmem:[%s0 + $0x10] sm:$0xff]
    %v39 = vld [vmem:[%s0 + $0x18] sm:$0xff]
    %v40 = vld [vmem:[%s0 + $0x20] sm:$0xff]
    %v41 = vld [vmem:[%s0 + $0x28] sm:$0xff]
    %v42 = vld [vmem:[%s0 + $0x30] sm:$0xff]
    %v43 = vld [vmem:[%s0 + $0x38] sm:$0xff]
    %v44 = vld [vmem:[%s0 + $0x40] sm:$0xff]
    %v45 = vld [vmem:[%s0 + $0x48] sm:$0xff]
    %v46 = vld [vmem:[%s0 + $0x50] sm:$0xff]
    %v47 = vld [vmem:[%s0 + $0x58] sm:$0xff]
    %v48 = vld [vmem:[%s0 + $0x60] sm:$0xff]
    %v49 = vld [vmem:[%s0 + $0x68] sm:$0xff]
    %v50 = vld [vmem:[%s0 + $0x70] sm:$0xff]
    %v51 = vld [vmem:[%s0 + $0x78] sm:$0xff]
    %v52 = vld [vmem:[%s1] sm:$0xff]
    %v53 = vld [vmem:[%s1 + $0x8] sm:$0xff]
    %v54 = vld [vmem:[%s1 + $0x10] sm:$0xff]
    %v55 = vld [vmem:[%s1 + $0x18] sm:$0xff]
    %v56 = vld [vmem:[%s1 + $0x20] sm:$0xff]
    %v57 = vld [vmem:[%s1 + $0x28] sm:$0xff]
    %v58 = vld [vmem:[%s1 + $0x30] sm:$0xff]
    %v59 = vld [vmem:[%s1 + $0x38] sm:$0xff]
    %v60 = vld [vmem:[%s1 + $0x40] sm:$0xff]
    %v61 = vld [vmem:[%s1 + $0x48] sm:$0xff]
    %v62 = vld [vmem:[%s1 + $0x50] sm:$0xff]
    %v63 = vld [vmem:[%s1 + $0x58] sm:$0xff]
    %v64 = vld [vmem:[%s1 + $0x60] sm:$0xff]
    %v65 = vld [vmem:[%s1 + $0x68] sm:$0xff]
    %v66 = vld [vmem:[%s1 + $0x70] sm:$0xff]
    %v67 = vld [vmem:[%s1 + $0x78] sm:$0xff]
    %s68 = smul.u32 0, 128
    %v69 = vstv %s68
    %v70 = vsub.s32 %v52, %v69
    %v71 = vsub.s32 %v53, %v69
    %v72 = vsub.s32 %v54, %v69
    %v73 = vsub.s32 %v55, %v69
    %v74 = vsub.s32 %v56, %v69
    %v75 = vsub.s32 %v57, %v69
    %v76 = vsub.s32 %v58, %v69
    %v77 = vsub.s32 %v59, %v69
    %v78 = vsub.s32 %v60, %v69
    %v79 = vsub.s32 %v61, %v69
    %v80 = vsub.s32 %v62, %v69
    %v81 = vsub.s32 %v63, %v69
    %v82 = vsub.s32 %v64, %v69
    %v83 = vsub.s32 %v65, %v69
    %v84 = vsub.s32 %v66, %v69
    %v85 = vsub.s32 %v67, %v69
    %v86 = vlaneseq
    %v87 = vand.u32 %v86, 127
    %88 = vset.pattern.permute.xlu0 0
    %89 = vperm.xlu0 %88, %v70
    %v90 = vpop.permute.xlu0 %89
    %91 = vset.pattern.permute.xlu0 0
    %92 = vperm.xlu0 %91, %v71
    %v93 = vpop.permute.xlu0 %92
    %94 = vset.pattern.permute.xlu0 0
    %95 = vperm.xlu0 %94, %v72
    %v96 = vpop.permute.xlu0 %95
    %97 = vset.pattern.permute.xlu0 0
    %98 = vperm.xlu0 %97, %v73
    %v99 = vpop.permute.xlu0 %98
    %100 = vset.pattern.permute.xlu0 0
    %101 = vperm.xlu0 %100, %v74
    %v102 = vpop.permute.xlu0 %101
    %103 = vset.pattern.permute.xlu0 0
    %104 = vperm.xlu0 %103, %v75
    %v105 = vpop.permute.xlu0 %104
    %106 = vset.pattern.permute.xlu0 0
    %107 = vperm.xlu0 %106, %v76
    %v108 = vpop.permute.xlu0 %107
    %109 = vset.pattern.permute.xlu0 0
    %110 = vperm.xlu0 %109, %v77
    %v111 = vpop.permute.xlu0 %110
    %112 = vset.pattern.permute.xlu0 0
    %113 = vperm.xlu0 %112, %v78
    %v114 = vpop.permute.xlu0 %113
    %115 = vset.pattern.permute.xlu0 0
    %116 = vperm.xlu0 %115, %v79
    %v117 = vpop.permute.xlu0 %116
    %118 = vset.pattern.permute.xlu0 0
    %119 = vperm.xlu0 %118, %v80
    %v120 = vpop.permute.xlu0 %119
    %121 = vset.pattern.permute.xlu0 0
    %122 = vperm.xlu0 %121, %v81
    %v123 = vpop.permute.xlu0 %122
    %124 = vset.pattern.permute.xlu0 0
    %125 = vperm.xlu0 %124, %v82
    %v126 = vpop.permute.xlu0 %125
    %127 = vset.pattern.permute.xlu0 0
    %128 = vperm.xlu0 %127, %v83
    %v129 = vpop.permute.xlu0 %128
    %130 = vset.pattern.permute.xlu0 0
    %131 = vperm.xlu0 %130, %v84
    %v132 = vpop.permute.xlu0 %131
    %133 = vset.pattern.permute.xlu0 0
    %134 = vperm.xlu0 %133, %v85
    %v135 = vpop.permute.xlu0 %134
    %vm136 = vcmp.eq.s32.totalorder %v87, %v90
    %vm137 = vcmp.eq.s32.totalorder %v87, %v93
    %vm138 = vcmp.eq.s32.totalorder %v87, %v96
    %vm139 = vcmp.eq.s32.totalorder %v87, %v99
    %vm140 = vcmp.eq.s32.totalorder %v87, %v102
    %vm141 = vcmp.eq.s32.totalorder %v87, %v105
    %vm142 = vcmp.eq.s32.totalorder %v87, %v108
    %vm143 = vcmp.eq.s32.totalorder %v87, %v111
    %vm144 = vcmp.eq.s32.totalorder %v87, %v114
    %vm145 = vcmp.eq.s32.totalorder %v87, %v117
    %vm146 = vcmp.eq.s32.totalorder %v87, %v120
    %vm147 = vcmp.eq.s32.totalorder %v87, %v123
    %vm148 = vcmp.eq.s32.totalorder %v87, %v126
    %vm149 = vcmp.eq.s32.totalorder %v87, %v129
    %vm150 = vcmp.eq.s32.totalorder %v87, %v132
    %vm151 = vcmp.eq.s32.totalorder %v87, %v135
    %v152 = vsel %vm136, %v36, 0.0
    %v153 = vsel %vm137, %v37, 0.0
    %v154 = vsel %vm138, %v38, 0.0
    %v155 = vsel %vm139, %v39, 0.0
    %v156 = vsel %vm140, %v40, 0.0
    %v157 = vsel %vm141, %v41, 0.0
    %v158 = vsel %vm142, %v42, 0.0
    %v159 = vsel %vm143, %v43, 0.0
    %v160 = vsel %vm144, %v44, 0.0
    %v161 = vsel %vm145, %v45, 0.0
    %v162 = vsel %vm146, %v46, 0.0
    %v163 = vsel %vm147, %v47, 0.0
    %v164 = vsel %vm148, %v48, 0.0
    %v165 = vsel %vm149, %v49, 0.0
    %v166 = vsel %vm150, %v50, 0.0
    %v167 = vsel %vm151, %v51, 0.0
    %168 = vadd.xlane.f32.xlu0 %v152
    %v169 = vpop.xlane.xlu0 %168
    %170 = vadd.xlane.f32.xlu0 %v153
    %v171 = vpop.xlane.xlu0 %170
    %172 = vadd.xlane.f32.xlu0 %v154
    %v173 = vpop.xlane.xlu0 %172
    %174 = vadd.xlane.f32.xlu0 %v155
    %v175 = vpop.xlane.xlu0 %174
    %176 = vadd.xlane.f32.xlu0 %v156
    %v177 = vpop.xlane.xlu0 %176
    %178 = vadd.xlane.f32.xlu0 %v157
    %v179 = vpop.xlane.xlu0 %178
    %180 = vadd.xlane.f32.xlu0 %v158
    %v181 = vpop.xlane.xlu0 %180
    %182 = vadd.xlane.f32.xlu0 %v159
    %v183 = vpop.xlane.xlu0 %182
    %184 = vadd.xlane.f32.xlu0 %v160
    %v185 = vpop.xlane.xlu0 %184
    %186 = vadd.xlane.f32.xlu0 %v161
    %v187 = vpop.xlane.xlu0 %186
    %188 = vadd.xlane.f32.xlu0 %v162
    %v189 = vpop.xlane.xlu0 %188
    %190 = vadd.xlane.f32.xlu0 %v163
    %v191 = vpop.xlane.xlu0 %190
    %192 = vadd.xlane.f32.xlu0 %v164
    %v193 = vpop.xlane.xlu0 %192
    %194 = vadd.xlane.f32.xlu0 %v165
    %v195 = vpop.xlane.xlu0 %194
    %196 = vadd.xlane.f32.xlu0 %v166
    %v197 = vpop.xlane.xlu0 %196
    %198 = vadd.xlane.f32.xlu0 %v167
    %v199 = vpop.xlane.xlu0 %198
    %v200 = vld [vmem:[#allocation2] sm:$0xff]
    %v201 = vld [vmem:[#allocation2 + $0x8] sm:$0xff]
    %v202 = vld [vmem:[#allocation2 + $0x10] sm:$0xff]
    %v203 = vld [vmem:[#allocation2 + $0x18] sm:$0xff]
    %v204 = vld [vmem:[#allocation2 + $0x20] sm:$0xff]
    %v205 = vld [vmem:[#allocation2 + $0x28] sm:$0xff]
    %v206 = vld [vmem:[#allocation2 + $0x30] sm:$0xff]
    %v207 = vld [vmem:[#allocation2 + $0x38] sm:$0xff]
    %v208 = vld [vmem:[#allocation2 + $0x40] sm:$0xff]
    %v209 = vld [vmem:[#allocation2 + $0x48] sm:$0xff]
    %v210 = vld [vmem:[#allocation2 + $0x50] sm:$0xff]
    %v211 = vld [vmem:[#allocation2 + $0x58] sm:$0xff]
    %v212 = vld [vmem:[#allocation2 + $0x60] sm:$0xff]
    %v213 = vld [vmem:[#allocation2 + $0x68] sm:$0xff]
    %v214 = vld [vmem:[#allocation2 + $0x70] sm:$0xff]
    %v215 = vld [vmem:[#allocation2 + $0x78] sm:$0xff]
    %v216 = vadd.f32 %v200, %v169
    %v217 = vadd.f32 %v201, %v171
    %v218 = vadd.f32 %v202, %v173
    %v219 = vadd.f32 %v203, %v175
    %v220 = vadd.f32 %v204, %v177
    %v221 = vadd.f32 %v205, %v179
    %v222 = vadd.f32 %v206, %v181
    %v223 = vadd.f32 %v207, %v183
    %v224 = vadd.f32 %v208, %v185
    %v225 = vadd.f32 %v209, %v187
    %v226 = vadd.f32 %v210, %v189
    %v227 = vadd.f32 %v211, %v191
    %v228 = vadd.f32 %v212, %v193
    %v229 = vadd.f32 %v213, %v195
    %v230 = vadd.f32 %v214, %v197
    %v231 = vadd.f32 %v215, %v199
    %vm232 = vcmask 7168
    %233 = vst.msk [vmem:[#allocation2] sm:$0xff] %vm232, %v216
    %234 = vst.msk [vmem:[#allocation2 + $0x8] sm:$0xff] %vm232, %v217
    %235 = vst.msk [vmem:[#allocation2 + $0x10] sm:$0xff] %vm232, %v218
    %236 = vst.msk [vmem:[#allocation2 + $0x18] sm:$0xff] %vm232, %v219
    %237 = vst.msk [vmem:[#allocation2 + $0x20] sm:$0xff] %vm232, %v220
    %238 = vst.msk [vmem:[#allocation2 + $0x28] sm:$0xff] %vm232, %v221
    %239 = vst.msk [vmem:[#allocation2 + $0x30] sm:$0xff] %vm232, %v222
    %240 = vst.msk [vmem:[#allocation2 + $0x38] sm:$0xff] %vm232, %v223
    %241 = vst.msk [vmem:[#allocation2 + $0x40] sm:$0xff] %vm232, %v224
    %242 = vst.msk [vmem:[#allocation2 + $0x48] sm:$0xff] %vm232, %v225
    %243 = vst.msk [vmem:[#allocation2 + $0x50] sm:$0xff] %vm232, %v226
    %244 = vst.msk [vmem:[#allocation2 + $0x58] sm:$0xff] %vm232, %v227
    %245 = vst.msk [vmem:[#allocation2 + $0x60] sm:$0xff] %vm232, %v228
    %246 = vst.msk [vmem:[#allocation2 + $0x68] sm:$0xff] %vm232, %v229
    %247 = vst.msk [vmem:[#allocation2 + $0x70] sm:$0xff] %vm232, %v230
    %248 = vst.msk [vmem:[#allocation2 + $0x78] sm:$0xff] %vm232, %v231
    // Predicated region
    $region18: #{tpu_custom_call.1} parent=1 // pred_check
      %p249 = pneg %p15
    $region19: #{tpu_custom_call.1} parent=1 // pred_check_branch
      %251 = sbr.rel (%p249) target = $region21
    $region20: #{tpu_custom_call.1} parent=1 // pred_region
      %v252 = vld [vmem:[#allocation2] sm:$0xff]
      %v253 = vld [vmem:[#allocation2 + $0x8] sm:$0xff]
      %v254 = vld [vmem:[#allocation2 + $0x10] sm:$0xff]
      %v255 = vld [vmem:[#allocation2 + $0x18] sm:$0xff]
      %v256 = vld [vmem:[#allocation2 + $0x20] sm:$0xff]
      %v257 = vld [vmem:[#allocation2 + $0x28] sm:$0xff]
      %v258 = vld [vmem:[#allocation2 + $0x30] sm:$0xff]
      %v259 = vld [vmem:[#allocation2 + $0x38] sm:$0xff]
      %v260 = vld [vmem:[#allocation2 + $0x40] sm:$0xff]
      %v261 = vld [vmem:[#allocation2 + $0x48] sm:$0xff]
      %v262 = vld [vmem:[#allocation2 + $0x50] sm:$0xff]
      %v263 = vld [vmem:[#allocation2 + $0x58] sm:$0xff]
      %v264 = vld [vmem:[#allocation2 + $0x60] sm:$0xff]
      %v265 = vld [vmem:[#allocation2 + $0x68] sm:$0xff]
      %v266 = vld [vmem:[#allocation2 + $0x70] sm:$0xff]
      %v267 = vld [vmem:[#allocation2 + $0x78] sm:$0xff]
      %v268 = vsub.f32 0.0, %v252
      %v269 = vsub.f32 0.0, %v253
      %v270 = vsub.f32 0.0, %v254
      %v271 = vsub.f32 0.0, %v255
      %v272 = vsub.f32 0.0, %v256
      %v273 = vsub.f32 0.0, %v257
      %v274 = vsub.f32 0.0, %v258
      %v275 = vsub.f32 0.0, %v259
      %v276 = vsub.f32 0.0, %v260
      %v277 = vsub.f32 0.0, %v261
      %v278 = vsub.f32 0.0, %v262
      %v279 = vsub.f32 0.0, %v263
      %v280 = vsub.f32 0.0, %v264
      %v281 = vsub.f32 0.0, %v265
      %v282 = vsub.f32 0.0, %v266
      %v283 = vsub.f32 0.0, %v267
      %v284 = vld [vmem:[%s2] sm:$0xff]
      %v285 = vld [vmem:[%s2 + $0x8] sm:$0xff]
      %v286 = vld [vmem:[%s2 + $0x10] sm:$0xff]
      %v287 = vld [vmem:[%s2 + $0x18] sm:$0xff]
      %v288 = vld [vmem:[%s2 + $0x20] sm:$0xff]
      %v289 = vld [vmem:[%s2 + $0x28] sm:$0xff]
      %v290 = vld [vmem:[%s2 + $0x30] sm:$0xff]
      %v291 = vld [vmem:[%s2 + $0x38] sm:$0xff]
      %v292 = vld [vmem:[%s2 + $0x40] sm:$0xff]
      %v293 = vld [vmem:[%s2 + $0x48] sm:$0xff]
      %v294 = vld [vmem:[%s2 + $0x50] sm:$0xff]
      %v295 = vld [vmem:[%s2 + $0x58] sm:$0xff]
      %v296 = vld [vmem:[%s2 + $0x60] sm:$0xff]
      %v297 = vld [vmem:[%s2 + $0x68] sm:$0xff]
      %v298 = vld [vmem:[%s2 + $0x70] sm:$0xff]
      %v299 = vld [vmem:[%s2 + $0x78] sm:$0xff]
      %v300 = vmul.f32 %v268, %v284
      %v301 = vmul.f32 %v269, %v285
      %v302 = vmul.f32 %v270, %v286
      %v303 = vmul.f32 %v271, %v287
      %v304 = vmul.f32 %v272, %v288
      %v305 = vmul.f32 %v273, %v289
      %v306 = vmul.f32 %v274, %v290
      %v307 = vmul.f32 %v275, %v291
      %v308 = vmul.f32 %v276, %v292
      %v309 = vmul.f32 %v277, %v293
      %v310 = vmul.f32 %v278, %v294
      %v311 = vmul.f32 %v279, %v295
      %v312 = vmul.f32 %v280, %v296
      %v313 = vmul.f32 %v281, %v297
      %v314 = vmul.f32 %v282, %v298
      %v315 = vmul.f32 %v283, %v299
      %332 = vset.pattern.permute.xlu0 0
      %333 = vperm.xlu0 %332, %v300
      %v334 = vpop.permute.xlu0 %333
      %335 = vset.pattern.permute.xlu0 0
      %336 = vperm.xlu0 %335, %v301
      %v337 = vpop.permute.xlu0 %336
      %338 = vset.pattern.permute.xlu0 0
      %339 = vperm.xlu0 %338, %v302
      %v340 = vpop.permute.xlu0 %339
      %341 = vset.pattern.permute.xlu0 0
      %342 = vperm.xlu0 %341, %v303
      %v343 = vpop.permute.xlu0 %342
      %344 = vset.pattern.permute.xlu0 0
      %345 = vperm.xlu0 %344, %v304
      %v346 = vpop.permute.xlu0 %345
      %347 = vset.pattern.permute.xlu0 0
      %348 = vperm.xlu0 %347, %v305
      %v349 = vpop.permute.xlu0 %348
      %350 = vset.pattern.permute.xlu0 0
      %351 = vperm.xlu0 %350, %v306
      %v352 = vpop.permute.xlu0 %351
      %353 = vset.pattern.permute.xlu0 0
      %354 = vperm.xlu0 %353, %v307
      %v355 = vpop.permute.xlu0 %354
      %356 = vset.pattern.permute.xlu0 0
      %357 = vperm.xlu0 %356, %v308
      %v358 = vpop.permute.xlu0 %357
      %359 = vset.pattern.permute.xlu0 0
      %360 = vperm.xlu0 %359, %v309
      %v361 = vpop.permute.xlu0 %360
      %362 = vset.pattern.permute.xlu0 0
      %363 = vperm.xlu0 %362, %v310
      %v364 = vpop.permute.xlu0 %363
      %365 = vset.pattern.permute.xlu0 0
      %366 = vperm.xlu0 %365, %v311
      %v367 = vpop.permute.xlu0 %366
      %368 = vset.pattern.permute.xlu0 0
      %369 = vperm.xlu0 %368, %v312
      %v370 = vpop.permute.xlu0 %369
      %371 = vset.pattern.permute.xlu0 0
      %372 = vperm.xlu0 %371, %v313
      %v373 = vpop.permute.xlu0 %372
      %374 = vset.pattern.permute.xlu0 0
      %375 = vperm.xlu0 %374, %v314
      %v376 = vpop.permute.xlu0 %375
      %377 = vset.pattern.permute.xlu0 0
      %378 = vperm.xlu0 %377, %v315
      %v379 = vpop.permute.xlu0 %378
      %v380 = vperm.slane %v334, %v87
      %v381 = vadd.s32 %v87, 4294967288
      %v382 = vperm.slane %v337, %v381
      %vm383 = vcmask 130112
      %v384 = vsel %vm383, %v382, %v380
      %v385 = vadd.s32 %v87, 4294967280
      %v386 = vperm.slane %v340, %v385
      %vm387 = vcmask 195712
      %v388 = vsel %vm387, %v386, %v384
      %v389 = vadd.s32 %v87, 4294967272
      %v390 = vperm.slane %v343, %v389
      %vm391 = vcmask 261312
      %v392 = vsel %vm391, %v390, %v388
      %v393 = vadd.s32 %v87, 4294967264
      %v394 = vperm.slane %v346, %v393
      %vm395 = vcmask 326912
      %v396 = vsel %vm395, %v394, %v392
      %v397 = vadd.s32 %v87, 4294967256
      %v398 = vperm.slane %v349, %v397
      %vm399 = vcmask 392512
      %v400 = vsel %vm399, %v398, %v396
      %v401 = vadd.s32 %v87, 4294967248
      %v402 = vperm.slane %v352, %v401
      %vm403 = vcmask 458112
      %v404 = vsel %vm403, %v402, %v400
      %v405 = vadd.s32 %v87, 4294967240
      %v406 = vperm.slane %v355, %v405
      %vm407 = vcmask 523712
      %v408 = vsel %vm407, %v406, %v404
      %v409 = vadd.s32 %v87, 4294967232
      %v410 = vperm.slane %v358, %v409
      %vm411 = vcmask 589312
      %v412 = vsel %vm411, %v410, %v408
      %v413 = vadd.s32 %v87, 4294967224
      %v414 = vperm.slane %v361, %v413
      %vm415 = vcmask 654912
      %v416 = vsel %vm415, %v414, %v412
      %v417 = vadd.s32 %v87, 4294967216
      %v418 = vperm.slane %v364, %v417
      %vm419 = vcmask 720512
      %v420 = vsel %vm419, %v418, %v416
      %v421 = vadd.s32 %v87, 4294967208
      %v422 = vperm.slane %v367, %v421
      %vm423 = vcmask 786112
      %v424 = vsel %vm423, %v422, %v420
      %v425 = vadd.s32 %v87, 4294967200
      %v426 = vperm.slane %v370, %v425
      %vm427 = vcmask 851712
      %v428 = vsel %vm427, %v426, %v424
      %v429 = vadd.s32 %v87, 4294967192
      %v430 = vperm.slane %v373, %v429
      %vm431 = vcmask 917312
      %v432 = vsel %vm431, %v430, %v428
      %v433 = vadd.s32 %v87, 4294967184
      %v434 = vperm.slane %v376, %v433
      %vm435 = vcmask 982912
      %v436 = vsel %vm435, %v434, %v432
      %v437 = vadd.s32 %v87, 4294967176
      %v438 = vperm.slane %v379, %v437
      %vm439 = vcmask 1048512
      %v440 = vsel %vm439, %v438, %v436
      %442 = vst [vmem:[#allocation3] sm:$0x1] %v440
    $region21: #{tpu_custom_call.1} parent=1 // pred_fallthru
      _
    // Predicated region
    $region22: #{tpu_custom_call.1} parent=1 // pred_check
      _
    $region23: #{tpu_custom_call.1} parent=1 // pred_check_branch
      %444 = sbr.rel (0) target = $region25
    $region24: #{tpu_custom_call.1} parent=1 // pred_region
      %446 = vsyncadd [#allocation4], 0
      %s448 = sshll.u32 [#allocation3], 4
      %s449 = int_to_ptr.vmem [resolvable:$true] %s448
      %s450 = sshll.u32 %s3, 4
      %s451 = int_to_ptr.hbm [resolvable:$true] %s450
      %453 = dma.vmem_to_hbm [thread:$0]  %s449, 16, %s451, [#allocation4]
    $region25: #{tpu_custom_call.1} parent=1 // pred_fallthru
      _
    // Predicated region
    $region26: #{tpu_custom_call.1} parent=1 // pred_check
      _
    $region27: #{tpu_custom_call.1} parent=1 // pred_check_branch
      %455 = sbr.rel (0) target = $region29
    $region28: #{tpu_custom_call.1} parent=1 // pred_region
      %457 = dma.done [#allocation4], 16
    $region29: #{tpu_custom_call.1} parent=1 // pred_fallthru
      _
    %458 = vsyncpa [#allocation4], 1

</llo_original>
